<compile_context>
chip_gen: v7x
topology: tpu7x:2x2x1
jax: 0.10.0
libtpu: 0.0.40
codegen_flags: <defaults>
</compile_context>

<pallas_src>
import functools

import jax
import jax.numpy as jnp
from jax.experimental import pallas as pl
from jax.experimental.pallas import tpu as pltpu


def _round_up(x, m):
    return ((x + m - 1) // m) * m


def _bpr_kernel(u_ref, pos_ref, neg_ref, out_ref, *, weight_decay, num_rows,
                tb, ragged):
    u = u_ref[...].astype(jnp.float32)
    p = pos_ref[...].astype(jnp.float32)
    n = neg_ref[...].astype(jnp.float32)

    # Fused BPR score: sum(u * (pos - neg)) along the embedding (lane) axis.
    x_upn = jnp.sum(u * (p - n), axis=1, keepdims=True)             # (tb, 1)

    # Numerically stable logsigmoid(x) = min(x, 0) - log1p(exp(-|x|)).
    log_sig = jnp.minimum(x_upn, 0.0) - jnp.log1p(jnp.exp(-jnp.abs(x_upn)))

    # Per-row squared L2 norms of all three embeddings, summed.
    sq_row = jnp.sum(u * u + p * p + n * n, axis=1, keepdims=True)  # (tb, 1)

    row_loss = weight_decay * sq_row - log_sig                      # (tb, 1)

    # One lane-dense (8,128) output block per grid step: the tile's partial
    # sum lives at [0, 0], zeros elsewhere.  Single unmasked vst per step.
    sub = jax.lax.broadcasted_iota(jnp.int32, (8, 128), 0)
    lane = jax.lax.broadcasted_iota(jnp.int32, (8, 128), 1)

    def store(partial):
        out_ref[...] = jnp.where((sub == 0) & (lane == 0), partial, 0.0)

    if not ragged:
        # tb divides B exactly: no masking anywhere.
        store(jnp.sum(row_loss))
    else:
        i = pl.program_id(0)
        is_last = i == pl.num_programs(0) - 1

        @pl.when(jnp.logical_not(is_last))
        def _():
            store(jnp.sum(row_loss))

        @pl.when(is_last)
        def _():
            row_ids = i * tb + jax.lax.broadcasted_iota(jnp.int32, (tb, 1), 0)
            store(jnp.sum(jnp.where(row_ids < num_rows, row_loss, 0.0)))


def _vmem_capacity_bytes():
    try:
        return int(pltpu.get_tpu_info().vmem_capacity_bytes)
    except Exception:
        # Conservative fallback: v7x per-TensorCore VMEM (safe on v5e/v6e too).
        return 64 * 1024 * 1024


def _choose_batch_tile(B, D, dtype, vmem_cap):
    """Pick the batch tile size tb (multiple of the dtype's sublane packing)."""
    dt = jnp.dtype(dtype)
    itemsize = dt.itemsize
    # Sublane packing: f32 -> 8, bf16 -> 16, int8/fp8 -> 32 rows per (.,128) tile.
    row_align = 8 * max(1, 4 // itemsize)
    lanes = _round_up(D, 128)                 # VMEM blocks are lane-padded to 128
    in_row_bytes = lanes * itemsize           # per input, per row (padded)
    f32_row_bytes = lanes * 4                 # upcast temporaries

    # (a) Streaming sweet spot: ~4 MiB per input block already reaches the HBM
    #     roofline on v5e/v6e/v7x; bigger only burns VMEM headroom.
    target_block_bytes = 4 * 1024 * 1024
    tb_stream = max(row_align,
                    (target_block_bytes // in_row_bytes) // row_align * row_align)

    # (b) VMEM budget: 3 inputs x 2 pipeline buffers (lane-padded) + ~3 f32
    #     upcast temporaries, against ~50% of capacity (leaves headroom for
    #     output buffers and Mosaic internal scratch).
    budget = vmem_cap // 2
    per_row_cost = 3 * 2 * in_row_bytes + 3 * f32_row_bytes
    tb_vmem = max(row_align, (budget // per_row_cost) // row_align * row_align)

    # (c) Keep >= 2 grid steps (v7x megacore + DMA/compute overlap), >= 4 when
    #     the batch allows it.
    if B > 4 * row_align:
        min_steps = 4
    elif B > row_align:
        min_steps = 2
    else:
        min_steps = 1
    tb_steps = max(row_align, _round_up(pl.cdiv(B, min_steps), row_align))

    return min(tb_stream, tb_vmem, tb_steps, _round_up(B, row_align))


def bpr_loss(u_idx, pos_idx, neg_idx, *, weight_decay, batch_size, tb=None):
    """BPR loss via a Pallas TPU kernel. Inputs: (B, D) embeddings."""
    B, D = u_idx.shape
    assert pos_idx.shape == (B, D) and neg_idx.shape == (B, D)

    vmem_cap = _vmem_capacity_bytes()
    if tb is None:
        tb = _choose_batch_tile(B, D, u_idx.dtype, vmem_cap)
    grid = pl.cdiv(B, tb)
    ragged = (B % tb) != 0

    kernel = functools.partial(
        _bpr_kernel,
        weight_decay=float(weight_decay),
        num_rows=B,
        tb=tb,
        ragged=ragged,
    )

    in_spec = pl.BlockSpec((tb, D), lambda i: (i, 0))
    partials = pl.pallas_call(
        kernel,
        out_shape=jax.ShapeDtypeStruct((grid * 8, 128), jnp.float32),
        grid_spec=pltpu.PrefetchScalarGridSpec(
            num_scalar_prefetch=0,
            grid=(grid,),
            in_specs=[in_spec, in_spec, in_spec],
            out_specs=pl.BlockSpec((8, 128), lambda i: (i, 0)),
        ),
        compiler_params=pltpu.CompilerParams(
            dimension_semantics=("parallel",),
            vmem_limit_bytes=int(vmem_cap * 0.75),
        ),
    )(u_idx, pos_idx, neg_idx)

    # Tiny final reduction (grid partials, mostly zeros) + normalization.
    return jnp.sum(partials) / jnp.float32(batch_size)


def bpr_loss_ref(u_idx, pos_idx, neg_idx, *, weight_decay, batch_size):
    """Pure-JAX reference matching the PyTorch forward."""
    u = u_idx.astype(jnp.float32)
    p = pos_idx.astype(jnp.float32)
    n = neg_idx.astype(jnp.float32)
    x_upos = jnp.sum(u * p, axis=1)
    x_uneg = jnp.sum(u * n, axis=1)
    x_upn = x_upos - x_uneg
    log_prob = jnp.sum(jax.nn.log_sigmoid(x_upn))
    reg = weight_decay * (
        jnp.sum(jnp.square(u)) + jnp.sum(jnp.square(p)) + jnp.sum(jnp.square(n)))
    return (-log_prob + reg) / batch_size


if __name__ == "__main__":
    weight_decay = 0.01
    key = jax.random.PRNGKey(0)

    # Case 1: batch divides the tile evenly (no masking path).
    B, D = 16, 32
    ku, kp, kn = jax.random.split(key, 3)
    u_idx = jax.random.normal(ku, (B, D), dtype=jnp.float32)
    pos_idx = jax.random.normal(kp, (B, D), dtype=jnp.float32)
    neg_idx = jax.random.normal(kn, (B, D), dtype=jnp.float32)

    out = bpr_loss(u_idx, pos_idx, neg_idx,
                   weight_decay=weight_decay, batch_size=B)
    out = jax.block_until_ready(out)
    ref = bpr_loss_ref(u_idx, pos_idx, neg_idx,
                       weight_decay=weight_decay, batch_size=B)
    assert jnp.allclose(out, ref, rtol=1e-5, atol=1e-5), (out, ref)

    # Case 2: ragged last tile (exercises the pl.when-masked path).
    B2, D2 = 20, 48
    k2 = jax.random.split(key, 6)
    u2 = jax.random.normal(k2[3], (B2, D2), dtype=jnp.float32)
    p2 = jax.random.normal(k2[4], (B2, D2), dtype=jnp.float32)
    n2 = jax.random.normal(k2[5], (B2, D2), dtype=jnp.float32)

    out2 = bpr_loss(u2, p2, n2, weight_decay=weight_decay, batch_size=B2)
    out2 = jax.block_until_ready(out2)
    ref2 = bpr_loss_ref(u2, p2, n2, weight_decay=weight_decay, batch_size=B2)
    assert jnp.allclose(out2, ref2, rtol=1e-5, atol=1e-5), (out2, ref2)

    print("KERNEL_OK")
</pallas_src>

<mosaic_0001>
module attributes {stable_mosaic.version = 11 : i64} {
  func.func @_bpr_kernel(%arg0: i32, %arg1: memref<8x32xf32, #tpu.memory_space<vmem>>, %arg2: memref<8x32xf32, #tpu.memory_space<vmem>>, %arg3: memref<8x32xf32, #tpu.memory_space<vmem>>, %arg4: memref<8x128xf32, #tpu.memory_space<vmem>>) attributes {dimension_semantics = [#tpu.dimension_semantics<parallel>], iteration_bounds = array<i64: 2>, scalar_prefetch = 0 : i64, scratch_operands = 0 : i64, tpu.core_type = #tpu.core_type<tc>, window_params = [{transform_indices = @transform_0, window_bounds = array<i64: 8, 32>}, {transform_indices = @transform_1, window_bounds = array<i64: 8, 32>}, {transform_indices = @transform_2, window_bounds = array<i64: 8, 32>}, {transform_indices = @transform_3, window_bounds = array<i64: 8, 128>}]} {
    %c0 = arith.constant 0 : index
    %c0_0 = arith.constant 0 : index
    %0 = vector.load %arg1[%c0, %c0_0] : memref<8x32xf32, #tpu.memory_space<vmem>>, vector<8x32xf32>
    %c0_1 = arith.constant 0 : index
    %c0_2 = arith.constant 0 : index
    %1 = vector.load %arg2[%c0_1, %c0_2] : memref<8x32xf32, #tpu.memory_space<vmem>>, vector<8x32xf32>
    %c0_3 = arith.constant 0 : index
    %c0_4 = arith.constant 0 : index
    %2 = vector.load %arg3[%c0_3, %c0_4] : memref<8x32xf32, #tpu.memory_space<vmem>>, vector<8x32xf32>
    %3 = arith.subf %1, %2 : vector<8x32xf32>
    %4 = arith.mulf %0, %3 : vector<8x32xf32>
    %cst = arith.constant dense<0.000000e+00> : vector<8xf32>
    %5 = vector.multi_reduction <add>, %4, %cst [1] : vector<8x32xf32> to vector<8xf32>
    %6 = vector.shape_cast %5 : vector<8xf32> to vector<8x1xf32>
    %cst_5 = arith.constant 0.000000e+00 : f32
    %7 = vector.broadcast %cst_5 : f32 to vector<8x1xf32>
    %8 = arith.minimumf %6, %7 : vector<8x1xf32>
    %9 = math.absf %6 : vector<8x1xf32>
    %cst_6 = arith.constant 0.000000e+00 : f32
    %10 = vector.broadcast %cst_6 : f32 to vector<8x1xf32>
    %11 = arith.subf %10, %9 : vector<8x1xf32>
    %12 = math.exp %11 : vector<8x1xf32>
    %13 = math.log1p %12 : vector<8x1xf32>
    %14 = arith.subf %8, %13 : vector<8x1xf32>
    %15 = arith.mulf %0, %0 : vector<8x32xf32>
    %16 = arith.mulf %1, %1 : vector<8x32xf32>
    %17 = arith.addf %15, %16 : vector<8x32xf32>
    %18 = arith.mulf %2, %2 : vector<8x32xf32>
    %19 = arith.addf %17, %18 : vector<8x32xf32>
    %cst_7 = arith.constant dense<0.000000e+00> : vector<8xf32>
    %20 = vector.multi_reduction <add>, %19, %cst_7 [1] : vector<8x32xf32> to vector<8xf32>
    %21 = vector.shape_cast %20 : vector<8xf32> to vector<8x1xf32>
    %cst_8 = arith.constant 0.00999999977 : f32
    %22 = vector.broadcast %cst_8 : f32 to vector<8x1xf32>
    %23 = arith.mulf %22, %21 : vector<8x1xf32>
    %24 = arith.subf %23, %14 : vector<8x1xf32>
    %25 = tpu.iota {dimensions = array<i32: 0>} : vector<8x128xi32>
    %26 = tpu.iota {dimensions = array<i32: 1>} : vector<8x128xi32>
    %27 = vector.shape_cast %24 : vector<8x1xf32> to vector<1x8x1xf32>
    %cst_9 = arith.constant dense<0.000000e+00> : vector<1xf32>
    %28 = vector.multi_reduction <add>, %27, %cst_9 [1, 2] : vector<1x8x1xf32> to vector<1xf32>
    %29 = vector.shape_cast %28 : vector<1xf32> to vector<1x1x1xf32>
    %30 = vector.extract %29[0, 0, 0] : f32 from vector<1x1x1xf32>
    %c0_i32 = arith.constant 0 : i32
    %31 = vector.broadcast %c0_i32 : i32 to vector<8x128xi32>
    %32 = arith.cmpi eq, %25, %31 : vector<8x128xi32>
    %c0_i32_10 = arith.constant 0 : i32
    %33 = vector.broadcast %c0_i32_10 : i32 to vector<8x128xi32>
    %34 = arith.cmpi eq, %26, %33 : vector<8x128xi32>
    %35 = arith.andi %32, %34 : vector<8x128xi1>
    %cst_11 = arith.constant 0.000000e+00 : f32
    %36 = vector.broadcast %30 : f32 to vector<8x128xf32>
    %37 = vector.broadcast %cst_11 : f32 to vector<8x128xf32>
    %38 = arith.select %35, %36, %37 : vector<8x128xi1>, vector<8x128xf32>
    %c0_12 = arith.constant 0 : index
    %c0_13 = arith.constant 0 : index
    %39 = vector.load %arg4[%c0_12, %c0_13] : memref<8x128xf32, #tpu.memory_space<vmem>>, vector<8x128xf32>
    tpu.vector_store %arg4[%c0_12, %c0_13], %38 {strides = array<i32>} : memref<8x128xf32, #tpu.memory_space<vmem>>, vector<8x128xf32>,
    return
  }
  func.func @transform_0(%arg0: i32) -> (i32, i32) {
    %c0_i32 = arith.constant 0 : i32
    %c0_i32_0 = arith.constant 0 : i32
    return %arg0, %c0_i32 : i32, i32
  }
  func.func @transform_1(%arg0: i32) -> (i32, i32) {
    %c0_i32 = arith.constant 0 : i32
    %c0_i32_0 = arith.constant 0 : i32
    return %arg0, %c0_i32 : i32, i32
  }
  func.func @transform_2(%arg0: i32) -> (i32, i32) {
    %c0_i32 = arith.constant 0 : i32
    %c0_i32_0 = arith.constant 0 : i32
    return %arg0, %c0_i32 : i32, i32
  }
  func.func @transform_3(%arg0: i32) -> (i32, i32) {
    %c0_i32 = arith.constant 0 : i32
    %c0_i32_0 = arith.constant 0 : i32
    return %arg0, %c0_i32 : i32, i32
  }
}

</mosaic_0001>

<llo_original>
// kernel: tpu_custom_call.1
$region0: #{tpu_custom_call.1}
  #allocation0 [shape = 'u32[]', space=smem, size = 0x4, offset = 0x4, fixed_abs, tag = 'smem constant byte address 0x4 - core index']
  #allocation1 [shape = 'u32[144,128]{1,0:T(1,128)}', space=vmem, size = 0x12000, scoped, tag = 'internal scratch']
  %s0 = inlined_call_operand.hbm [shape: f32[16,32], index: 0, kind: input, shape index: {}]
  %s1 = inlined_call_operand.hbm [shape: f32[16,32], index: 1, kind: input, shape index: {}]
  %s2 = inlined_call_operand.hbm [shape: f32[16,32], index: 2, kind: input, shape index: {}]
  %s3 = inlined_call_operand.hbm [shape: f32[16,128], index: 3, kind: output, shape index: {}]
  %s4 = sld [smem:[#allocation0]]
  $region57: #{tpu_custom_call.1} parent=0
    _
  %s6 = ssub.s32 1, %s4
  %s7 = scalar_select 0, %s6, %s4
  $region1: #{tpu_custom_call.1} parent=0
    #allocation2 [shape = 'u8[8192]{0}', space=vmem, size = 0x2000, scoped, tag = 'input window, operand 0']
    #allocation3 [shape = 's32[2]{0}', space=sflag, size = 0x8, scoped, tag = 'scoped memory for tpu_custom_call.1']
    #allocation4 [shape = 's32[2]{0}', space=sflag, size = 0x8, scoped, tag = 'scoped memory for tpu_custom_call.1']
    #allocation5 [shape = 'u8[8192]{0}', space=vmem, size = 0x2000, scoped, tag = 'input window, operand 1']
    #allocation6 [shape = 's32[2]{0}', space=sflag, size = 0x8, scoped, tag = 'scoped memory for tpu_custom_call.1']
    #allocation7 [shape = 'u8[8192]{0}', space=vmem, size = 0x2000, scoped, tag = 'input window, operand 2']
    #allocation8 [shape = 'u8[8192]{0}', space=vmem, size = 0x2000, scoped, tag = 'output window, operand 0']
    %8 = vsyncpa [#allocation3], 0
    %s9 = scalar_lea.sflag [#allocation3], 1
    %10 = vsyncpa %s9, 0
    %11 = vsyncpa [#allocation6], 0
    %s12 = scalar_lea.sflag [#allocation6], 1
    %13 = vsyncpa %s12, 0
    %14 = vsyncpa [#allocation4], 0
    %s15 = scalar_lea.sflag [#allocation4], 1
    %16 = vsyncpa %s15, 0
    loop: start=0, step=1, limit=4
    $region2: #{tpu_custom_call.1} parent=1 // loop_pre_header
      _
    $region3: #{tpu_custom_call.1} parent=1 // loop_header
      %s18 = sphi 0, %s22
      %p19 = scmp.ge.s32.totalorder %s18, 4
      %s28 = sphi 0, %s30
      %s31 = sphi 0, %s28
      %s32 = sphi 0, %s31
      %s48 = sphi 0, %s32
      %s54 = sphi 0, %s56
      %s57 = sphi 0, %s54
      %s58 = sphi 0, %s57
      %s74 = sphi 0, %s58
      %s80 = sphi 0, %s82
      %s83 = sphi 0, %s80
      %s84 = sphi 0, %s83
      %s100 = sphi 0, %s84
      %s106 = sphi 0, %s108
      %s109 = sphi 0, %s106
      %s110 = sphi 0, %s109
      %s126 = sphi 0, %s110
    $region4: #{tpu_custom_call.1} parent=1 // loop_header_branch
      %21 = sbr.rel (%p19) target = $region8
    $region5: #{tpu_custom_call.1} parent=1 // loop_body
      %s23 = ssub.s32 %s18, 1
      %s24 = ssub.s32 %s18, 2
      %s25 = sadd.s32 %s18, 1
      %s26 = ssub.s32 %s18, %s25
      %p27 = scmp.eq.s32.totalorder %s26, 0
      %s29 = sadd.s32 %s28, 1
      %s30 = scalar_select %p27, %s28, %s29
      %p33 = pneg %p27
      %p34 = scmp.eq.s32.totalorder %s18, 1
      %p35 = por %p33, %p34
      %p36 = scmp.ne.s32.totalorder %s28, %s31
      %p37 = scmp.eq.s32.totalorder %s18, 0
      %p38 = por %p36, %p37
      %p39 = scmp.ne.s32.totalorder %s28, %s31
      %p40 = scmp.eq.s32.totalorder %s23, 1
      %p41 = por %p39, %p40
      %p42 = scmp.ne.s32.totalorder %s31, %s32
      %p43 = scmp.eq.s32.totalorder %s23, 0
      %p44 = por %p42, %p43
      %p45 = scmp.ne.s32.totalorder %s31, %s32
      %p46 = scmp.eq.s32.totalorder %s24, 1
      %p47 = por %p45, %p46
      %p49 = scmp.ne.s32.totalorder %s32, %s48
      %p50 = scmp.eq.s32.totalorder %s24, 0
      %p51 = por %p49, %p50
      %s52 = ssub.s32 %s18, %s25
      %p53 = scmp.eq.s32.totalorder %s52, 0
      %s55 = sadd.s32 %s54, 1
      %s56 = scalar_select %p53, %s54, %s55
      %p59 = pneg %p53
      %p60 = scmp.eq.s32.totalorder %s18, 1
      %p61 = por %p59, %p60
      %p62 = scmp.ne.s32.totalorder %s54, %s57
      %p63 = scmp.eq.s32.totalorder %s18, 0
      %p64 = por %p62, %p63
      %p65 = scmp.ne.s32.totalorder %s54, %s57
      %p66 = scmp.eq.s32.totalorder %s23, 1
      %p67 = por %p65, %p66
      %p68 = scmp.ne.s32.totalorder %s57, %s58
      %p69 = scmp.eq.s32.totalorder %s23, 0
      %p70 = por %p68, %p69
      %p71 = scmp.ne.s32.totalorder %s57, %s58
      %p72 = scmp.eq.s32.totalorder %s24, 1
      %p73 = por %p71, %p72
      %p75 = scmp.ne.s32.totalorder %s58, %s74
      %p76 = scmp.eq.s32.totalorder %s24, 0
      %p77 = por %p75, %p76
      %s78 = ssub.s32 %s18, %s25
      %p79 = scmp.eq.s32.totalorder %s78, 0
      %s81 = sadd.s32 %s80, 1
      %s82 = scalar_select %p79, %s80, %s81
      %p85 = pneg %p79
      %p86 = scmp.eq.s32.totalorder %s18, 1
      %p87 = por %p85, %p86
      %p88 = scmp.ne.s32.totalorder %s80, %s83
      %p89 = scmp.eq.s32.totalorder %s18, 0
      %p90 = por %p88, %p89
      %p91 = scmp.ne.s32.totalorder %s80, %s83
      %p92 = scmp.eq.s32.totalorder %s23, 1
      %p93 = por %p91, %p92
      %p94 = scmp.ne.s32.totalorder %s83, %s84
      %p95 = scmp.eq.s32.totalorder %s23, 0
      %p96 = por %p94, %p95
      %p97 = scmp.ne.s32.totalorder %s83, %s84
      %p98 = scmp.eq.s32.totalorder %s24, 1
      %p99 = por %p97, %p98
      %p101 = scmp.ne.s32.totalorder %s84, %s100
      %p102 = scmp.eq.s32.totalorder %s24, 0
      %p103 = por %p101, %p102
      %s104 = ssub.s32 %s18, %s25
      %p105 = scmp.eq.s32.totalorder %s104, 0
      %s107 = sadd.s32 %s106, 1
      %s108 = scalar_select %p105, %s106, %s107
      %p111 = pneg %p105
      %p112 = scmp.eq.s32.totalorder %s18, 1
      %p113 = por %p111, %p112
      %p114 = scmp.ne.s32.totalorder %s106, %s109
      %p115 = scmp.eq.s32.totalorder %s18, 0
      %p116 = por %p114, %p115
      %p117 = scmp.ne.s32.totalorder %s106, %s109
      %p118 = scmp.eq.s32.totalorder %s23, 1
      %p119 = por %p117, %p118
      %p120 = scmp.ne.s32.totalorder %s109, %s110
      %p121 = scmp.eq.s32.totalorder %s23, 0
      %p122 = por %p120, %p121
      %p123 = scmp.ne.s32.totalorder %s109, %s110
      %p124 = scmp.eq.s32.totalorder %s24, 1
      %p125 = por %p123, %p124
      %p127 = scmp.ne.s32.totalorder %s110, %s126
      %p128 = scmp.eq.s32.totalorder %s24, 0
      %p129 = por %p127, %p128
      %p130 = scmp.le.s32.totalorder 1, %s18
      %p131 = scmp.lt.s32.totalorder %s18, 3
      %p132 = pnand %p130, %p131
      %p133 = pneg %p132
      // Predicated region
      $region9: #{tpu_custom_call.1} parent=5 // pred_check
        _
      $region10: #{tpu_custom_call.1} parent=5 // pred_check_branch
        %135 = sbr.rel (%p132) target = $region12
      $region11: #{tpu_custom_call.1} parent=5 // pred_region
        %s136 = ssub.s32 %s18, 1
      $region12: #{tpu_custom_call.1} parent=5 // pred_fallthru
        _
      %p137 = scmp.lt.s32.totalorder %s18, 2
      // Predicated region
      $region13: #{tpu_custom_call.1} parent=5 // pred_check
        %p138 = pneg %p137
      $region14: #{tpu_custom_call.1} parent=5 // pred_check_branch
        %140 = sbr.rel (%p138) target = $region16
      $region15: #{tpu_custom_call.1} parent=5 // pred_region
        // Predicated region
        $region17: #{tpu_custom_call.1} parent=15 // pred_check
          %p141 = pneg %p38
        $region18: #{tpu_custom_call.1} parent=15 // pred_check_branch
          %143 = sbr.rel (%p141) target = $region20
        $region19: #{tpu_custom_call.1} parent=15 // pred_region
          %s144 = sand.u32 %s28, 1
          %s145 = scalar_lea.sflag [#allocation3], %s144
          %s146 = sand.u32 %s28, 1
          %s147 = smul.addr %s146, 8
          %s148 = scalar_lea.vmem [#allocation2], %s147
          %s150 = ssub.s32 128, 128
          %151 = vsyncadd %s145, %s150
          %s152 = smul.addr %s18, 128
          %s153 = scalar_lea.hbm %s0, %s152
          %s155 = sshll.u32 %s148, 4
          %s156 = int_to_ptr.vmem [resolvable:$true] %s155
          %158 = dma.hbm_to_vmem [thread:$0]  %s153, 128, %s156, %s145
        $region20: #{tpu_custom_call.1} parent=15 // pred_fallthru
          _
        // Predicated region
        $region21: #{tpu_custom_call.1} parent=15 // pred_check
          %p159 = pneg %p64
        $region22: #{tpu_custom_call.1} parent=15 // pred_check_branch
          %161 = sbr.rel (%p159) target = $region24
        $region23: #{tpu_custom_call.1} parent=15 // pred_region
          %s162 = sand.u32 %s18, 1
          %s163 = scalar_lea.sflag [#allocation6], %s162
          %s164 = sand.u32 %s54, 1
          %s165 = smul.addr %s164, 8
          %s166 = scalar_lea.vmem [#allocation5], %s165
          %s168 = ssub.s32 128, 128
          %169 = vsyncadd %s163, %s168
          %s170 = smul.addr %s18, 128
          %s171 = scalar_lea.hbm %s1, %s170
          %s173 = sshll.u32 %s166, 4
          %s174 = int_to_ptr.vmem [resolvable:$true] %s173
          %176 = dma.hbm_to_vmem [thread:$0]  %s171, 128, %s174, %s163
        $region24: #{tpu_custom_call.1} parent=15 // pred_fallthru
          _
        // Predicated region
        $region25: #{tpu_custom_call.1} parent=15 // pred_check
          %p177 = pneg %p90
        $region26: #{tpu_custom_call.1} parent=15 // pred_check_branch
          %179 = sbr.rel (%p177) target = $region28
        $region27: #{tpu_custom_call.1} parent=15 // pred_region
          %s180 = sand.u32 %s18, 1
          %s181 = scalar_lea.sflag [#allocation6], %s180
          %s182 = sand.u32 %s80, 1
          %s183 = smul.addr %s182, 8
          %s184 = scalar_lea.vmem [#allocation7], %s183
          %s186 = ssub.s32 128, 128
          %187 = vsyncadd %s181, %s186
          %s188 = smul.addr %s18, 128
          %s189 = scalar_lea.hbm %s2, %s188
          %s191 = sshll.u32 %s184, 4
          %s192 = int_to_ptr.vmem [resolvable:$true] %s191
          %194 = dma.hbm_to_vmem [thread:$0]  %s189, 128, %s192, %s181
        $region28: #{tpu_custom_call.1} parent=15 // pred_fallthru
          _
      $region16: #{tpu_custom_call.1} parent=5 // pred_fallthru
        _
      %p195 = scmp.le.s32.totalorder 1, %s18
      %p196 = scmp.lt.s32.totalorder %s18, 3
      %p197 = pnand %p195, %p196
      %p198 = pneg %p197
      // Predicated region
      $region29: #{tpu_custom_call.1} parent=5 // pred_check
        _
      $region30: #{tpu_custom_call.1} parent=5 // pred_check_branch
        %200 = sbr.rel (%p197) target = $region32
      $region31: #{tpu_custom_call.1} parent=5 // pred_region
        %s201 = ssub.s32 %s18, 1
        %s202 = sand.u32 %s31, 1
        %s203 = scalar_lea.sflag [#allocation3], %s202
        %s204 = sand.u32 %s31, 1
        %s205 = smul.addr %s204, 8
        %s206 = scalar_lea.vmem [#allocation2], %s205
        // Predicated region
        $region33: #{tpu_custom_call.1} parent=31 // pred_check
          %p207 = pneg %p44
        $region34: #{tpu_custom_call.1} parent=31 // pred_check_branch
          %209 = sbr.rel (%p207) target = $region36
        $region35: #{tpu_custom_call.1} parent=31 // pred_region
          %210 = dma.done %s203, 128
        $region36: #{tpu_custom_call.1} parent=31 // pred_fallthru
          _
        %s211 = sand.u32 %s23, 1
        %s212 = scalar_lea.sflag [#allocation6], %s211
        %s213 = sand.u32 %s57, 1
        %s214 = smul.addr %s213, 8
        %s215 = scalar_lea.vmem [#allocation5], %s214
        // Predicated region
        $region37: #{tpu_custom_call.1} parent=31 // pred_check
          %p216 = pneg %p70
        $region38: #{tpu_custom_call.1} parent=31 // pred_check_branch
          %218 = sbr.rel (%p216) target = $region40
        $region39: #{tpu_custom_call.1} parent=31 // pred_region
          %219 = dma.done %s212, 128
        $region40: #{tpu_custom_call.1} parent=31 // pred_fallthru
          _
        %s220 = sand.u32 %s23, 1
        %s221 = scalar_lea.sflag [#allocation6], %s220
        %s222 = sand.u32 %s83, 1
        %s223 = smul.addr %s222, 8
        %s224 = scalar_lea.vmem [#allocation7], %s223
        // Predicated region
        $region41: #{tpu_custom_call.1} parent=31 // pred_check
          %p225 = pneg %p96
        $region42: #{tpu_custom_call.1} parent=31 // pred_check_branch
          %227 = sbr.rel (%p225) target = $region44
        $region43: #{tpu_custom_call.1} parent=31 // pred_region
          %228 = dma.done %s221, 128
        $region44: #{tpu_custom_call.1} parent=31 // pred_fallthru
          _
        %s229 = sand.u32 %s31, 1
        %s230 = scalar_lea.sflag [#allocation3], %s229
        %s231 = sand.u32 %s31, 1
        %s232 = smul.addr %s231, 8
        %s233 = scalar_lea.vmem [#allocation2], %s232
        %p234 = pneg %p44
        %p235 = pneg %p41
        %s236 = sand.u32 %s23, 1
        %s237 = scalar_lea.sflag [#allocation6], %s236
        %s238 = sand.u32 %s57, 1
        %s239 = smul.addr %s238, 8
        %s240 = scalar_lea.vmem [#allocation5], %s239
        %p241 = pneg %p70
        %p242 = pneg %p67
        %s243 = sand.u32 %s23, 1
        %s244 = scalar_lea.sflag [#allocation6], %s243
        %s245 = sand.u32 %s83, 1
        %s246 = smul.addr %s245, 8
        %s247 = scalar_lea.vmem [#allocation7], %s246
        %p248 = pneg %p96
        %p249 = pneg %p93
        %p250 = pneg %p122
        %p251 = pneg %p119
        %s252 = sand.u32 %s109, 1
        %s253 = scalar_lea.sflag [#allocation4], %s252
        %s254 = sand.u32 %s109, 1
        %s255 = smul.addr %s254, 8
        %s256 = scalar_lea.vmem [#allocation8], %s255
        %v257 = vld [vmem:[%s206] sm:$0xff]
        %v258 = vld [vmem:[%s215] sm:$0xff]
        %v259 = vld [vmem:[%s224] sm:$0xff]
        %v260 = vsub.f32 %v258, %v259
        %v261 = vmul.f32 %v257, %v260
        %vm262 = vcmask 261120
        %v263 = vsel %vm262, %v261, 0.0
        %264 = vadd.xlane.f32.xlu0 %v263
        %v265 = vpop.xlane.xlu0 %264
        %v266 = vmin.f32 %v265, 0.0
        %v267 = vand.u32 2147483647, %v265
        %v268 = vsub.f32 0.0, %v267
        %v269 = vmul.f32 %v268, 1.442695
        %v270 = vpow.pop %v269
        %v271 = vadd.f32 %v270, 1.0
        %v272 = vlog2.pop %v271
        %v273 = vmul.f32 %v272, 0.6931472
        %v274 = vmul.f32 -0.5, %v270
        %v275 = vadd.f32 %v274, 1.0
        %v276 = vmul.f32 %v275, %v270
        %v277 = vand.u32 2147483647, %v270
        %vm278 = vcmp.lt.f32.partialorder %v277, 0.0004427343
        %v279 = vsel %vm278, %v276, %v273
        %v280 = vsub.f32 %v266, %v279
        %v281 = vmul.f32 %v257, %v257
        %v282 = vmul.f32 %v258, %v258
        %v283 = vadd.f32 %v281, %v282
        %v284 = vmul.f32 %v259, %v259
        %v285 = vadd.f32 %v283, %v284
        %v286 = vsel %vm262, %v285, 0.0
        %287 = vadd.xlane.f32.xlu0 %v286
        %v288 = vpop.xlane.xlu0 %287
        %v289 = vmul.f32 %v288, 0.01
        %v290 = vsub.f32 %v289, %v280
        %v291 = vlaneseq
        %v292 = vshrl.u32 %v291, 7
        %v293 = vlaneseq
        %v294 = vand.u32 %v293, 127
        %vm295 = vcmask 7168
        %v296 = vsel %vm295, %v290, 0.0
        %297 = vadd.xlane.f32.xlu0 %v296
        %v298 = vpop.xlane.xlu0 %297
        %v299 = vrot.slane %v298, 4
        %v300 = vadd.f32 %v298, %v299
        %v301 = vrot.slane %v300, 2
        %v302 = vadd.f32 %v300, %v301
        %v303 = vrot.slane %v302, 1
        %v304 = vadd.f32 %v302, %v303
        %s305 = vtos %v304
        %vm306 = vcmp.eq.s32.totalorder %v292, 0
        %vm307 = vcmp.eq.s32.totalorder %v294, 0
        %vm308 = vmand %vm306, %vm307
        %v309 = vstv %s305
        %v310 = vsel %vm308, %v309, 0.0
        %311 = vst [vmem:[%s256] sm:$0xff] %v310
        %s312 = sand.u32 %s109, 1
        %s313 = scalar_lea.sflag [#allocation4], %s312
        %s314 = sand.u32 %s109, 1
        %s315 = smul.addr %s314, 8
        %s316 = scalar_lea.vmem [#allocation8], %s315
        // Predicated region
        $region45: #{tpu_custom_call.1} parent=31 // pred_check
          %p317 = pneg %p119
        $region46: #{tpu_custom_call.1} parent=31 // pred_check_branch
          %319 = sbr.rel (%p317) target = $region48
        $region47: #{tpu_custom_call.1} parent=31 // pred_region
          %s321 = ssub.s32 128, 128
          %322 = vsyncadd %s313, %s321
          %s323 = smul.addr %s23, 128
          %s324 = scalar_lea.hbm %s3, %s323
          %s326 = sshll.u32 %s316, 4
          %s327 = int_to_ptr.vmem [resolvable:$true] %s326
          %329 = dma.vmem_to_hbm [thread:$0]  %s327, 128, %s324, %s313
        $region48: #{tpu_custom_call.1} parent=31 // pred_fallthru
          _
      $region32: #{tpu_custom_call.1} parent=5 // pred_fallthru
        _
      %p330 = scmp.le.s32.totalorder 2, %s18
      // Predicated region
      $region49: #{tpu_custom_call.1} parent=5 // pred_check
        %p331 = pneg %p330
      $region50: #{tpu_custom_call.1} parent=5 // pred_check_branch
        %333 = sbr.rel (%p331) target = $region52
      $region51: #{tpu_custom_call.1} parent=5 // pred_region
        %s334 = ssub.s32 %s18, 2
        // Predicated region
        $region53: #{tpu_custom_call.1} parent=51 // pred_check
          %p335 = pneg %p125
        $region54: #{tpu_custom_call.1} parent=51 // pred_check_branch
          %337 = sbr.rel (%p335) target = $region56
        $region55: #{tpu_custom_call.1} parent=51 // pred_region
          %s338 = sand.u32 %s110, 1
          %s339 = scalar_lea.sflag [#allocation4], %s338
          %s340 = sand.u32 %s110, 1
          %s341 = smul.addr %s340, 8
          %s342 = scalar_lea.vmem [#allocation8], %s341
          %343 = dma.done %s339, 128
        $region56: #{tpu_custom_call.1} parent=51 // pred_fallthru
          _
      $region52: #{tpu_custom_call.1} parent=5 // pred_fallthru
        _
    $region6: #{tpu_custom_call.1} parent=1 // loop_footer
      %s22 = sadd.s32 1, %s18
    $region7: #{tpu_custom_call.1} parent=1 // loop_footer_branch
      %17 = sbr.rel target = $region3
    $region8: #{tpu_custom_call.1} parent=1 // loop_exit
      _
    %344 = vsyncpa [#allocation3], 1
    %s345 = scalar_lea.sflag [#allocation3], 1
    %346 = vsyncpa %s345, 1
    %347 = vsyncpa [#allocation6], 1
    %s348 = scalar_lea.sflag [#allocation6], 1
    %349 = vsyncpa %s348, 1
    %350 = vsyncpa [#allocation4], 1
    %s351 = scalar_lea.sflag [#allocation4], 1
    %352 = vsyncpa %s351, 1

</llo_original>
